<compile_context>
chip_gen: v7x
topology: tpu7x:2x2x1
jax: 0.10.0
libtpu: 0.0.40
codegen_flags: <defaults>
</compile_context>

<pallas_src>
from functools import partial

import jax
import jax.numpy as jnp
import numpy as np
from jax.experimental import pallas as pl
from jax.experimental.pallas import tpu as pltpu

LANE = 128      # pad the class dim to a full lane width -> unmasked stores
SUBLANE = 8     # pad the batch dim to a full sublane -> unmasked loads/stores


def _vmem():
    return pl.BlockSpec(memory_space=pltpu.MemorySpace.VMEM)


# ---------------------------------------------------------------------------
# Fused kernel: whole Combined_Model.forward in one pallas_call, one matmul
# ---------------------------------------------------------------------------

def fused_forward_kernel(p_ref, r_ref, img_ref, w_ref, b_ref, o_ref):
    """logits = concat([prompt_flat, response_flat, image_flat], -1) @ W + b.

    p_ref:   (Bp, Tp*D_tok)            flattened prompt tokens
    r_ref:   (Bp, Tr*D_tok)            flattened response tokens
    img_ref: (Bp, C*H*W)               flattened image pixels
    w_ref:   (Tp*D_tok+Tr*D_tok+C*H*W, K_pad)  folded weight (pool+proj+head)
    b_ref:   (1, K_pad)                folded bias
    o_ref:   (Bp, K_pad)               lane-dense output
    """
    # Lane-axis concat (all chunks are multiples of 128 lanes) -> single MXU dot.
    x = jnp.concatenate([p_ref[...], r_ref[...], img_ref[...]], axis=-1)
    o_ref[...] = (
        jnp.dot(x, w_ref[...], preferred_element_type=jnp.float32) + b_ref[...]
    )


# ---------------------------------------------------------------------------
# Offline parameter folding
# ---------------------------------------------------------------------------

def fold_params(params, *, t_prompt, t_response, img_chw):
    """Fold mean-pools, embedder projections, biases and the head into one
    (D_total, K_pad) weight and one (1, K_pad) bias."""
    C, H, W = img_chw
    P = params["patch"]
    n_patches = (H // P) * (W // P)
    K = params["b_head"].shape[1]
    k_pad = ((K + LANE - 1) // LANE) * LANE

    # Text branches: mean over T tokens + w_text + head == row-tiled weight / T.
    wp = params["w_text"] @ params["w_head_p"]                 # (D_tok, K)
    wr = params["w_text"] @ params["w_head_r"]                 # (D_tok, K)
    wp_rows = jnp.tile(wp / t_prompt, (t_prompt, 1))           # (Tp*D_tok, K)
    wr_rows = jnp.tile(wr / t_response, (t_response, 1))       # (Tr*D_tok, K)

    # Image branch: patchify + mean-over-patches is a fixed linear pooling
    # matrix over the flattened NCHW image; fold it into the weight so the
    # kernel consumes image.reshape(B, C*H*W) directly.
    # (On v5e's lower HBM BW the extra ~512 KiB of weight rows is ~break-even;
    #  on v6e/v7x it removes a whole XLA dispatch and wins.)
    d_patch = C * P * P
    f = np.arange(C * H * W)
    c_idx, rem = np.divmod(f, H * W)
    h_idx, w_idx = np.divmod(rem, W)
    g = c_idx * P * P + (h_idx % P) * P + (w_idx % P)
    pool = np.zeros((C * H * W, d_patch), np.float32)
    pool[f, g] = 1.0 / n_patches                               # (C*H*W, d_patch)
    wc = params["w_img"] @ params["w_head_c"]                  # (d_patch, K)
    wc_rows = jnp.asarray(pool) @ wc                           # (C*H*W, K)

    w_big = jnp.concatenate([wp_rows, wr_rows, wc_rows], axis=0)  # (D_total, K)
    b = (params["b_text"] @ params["w_head_p"]
         + params["b_text"] @ params["w_head_r"]
         + params["cls"] @ params["w_head_c"]
         + params["b_head"])                                   # (1, K)

    pad = ((0, 0), (0, k_pad - K))
    return {"w": jnp.pad(w_big, pad), "b": jnp.pad(b, pad)}


# ---------------------------------------------------------------------------
# Jitted wrapper (mirror of Combined_Model.forward)
# ---------------------------------------------------------------------------

@partial(jax.jit, static_argnames=("num_classes",))
def combined_model_forward(folded, prompt, response, image, *, num_classes):
    B = prompt.shape[0]
    b_pad = ((B + SUBLANE - 1) // SUBLANE) * SUBLANE

    def flat(x):
        x2 = x.reshape(B, -1)            # free row-major reshape (outside kernel)
        if b_pad != B:
            x2 = jnp.pad(x2, ((0, b_pad - B), (0, 0)))
        return x2

    p2, r2, img2 = flat(prompt), flat(response), flat(image)

    k_pad = folded["b"].shape[1]
    logits_pad = pl.pallas_call(
        fused_forward_kernel,
        out_shape=jax.ShapeDtypeStruct((b_pad, k_pad), jnp.float32),
        in_specs=[_vmem()] * 5,
        out_specs=_vmem(),
    )(p2, r2, img2, folded["w"], folded["b"])

    return logits_pad[:B, :num_classes]


# ---------------------------------------------------------------------------
# Pure-numpy float64 reference (mirrors the original, un-fused module structure)
# ---------------------------------------------------------------------------

def reference_forward_np(params, prompt, response, image):
    f64 = lambda a: np.asarray(a, np.float64)
    p, r, img = f64(prompt), f64(response), f64(image)
    w_text, b_text = f64(params["w_text"]), f64(params["b_text"])
    w_img, cls = f64(params["w_img"]), f64(params["cls"])
    w_head_p, w_head_r = f64(params["w_head_p"]), f64(params["w_head_r"])
    w_head_c, b_head = f64(params["w_head_c"]), f64(params["b_head"])

    pe = p.mean(axis=1) @ w_text + b_text
    re = r.mean(axis=1) @ w_text + b_text
    text_embedding = np.concatenate([pe, re], axis=1)

    B, C, H, W = img.shape
    P = params["patch"]
    x = img.reshape(B, C, H // P, P, W // P, P).transpose(0, 2, 4, 1, 3, 5)
    patches = x.reshape(B, (H // P) * (W // P), C * P * P)
    cls_tok = patches.mean(axis=1) @ w_img + cls

    combined = np.concatenate([text_embedding, cls_tok], axis=1)
    w_full = np.concatenate([w_head_p, w_head_r, w_head_c], axis=0)
    return combined @ w_full + b_head


# ---------------------------------------------------------------------------
# Main
# ---------------------------------------------------------------------------

if __name__ == "__main__":
    B = 2          # batch
    T = 8          # tokens per text sequence
    D_TOK = 32     # token feature dim
    D_TEXT = 32    # text embedding dim (per encode() call)
    C, H, W = 4, 16, 16
    PATCH = 4
    D_PATCH = C * PATCH * PATCH       # 64
    D_IMG = 32                        # image CLS dim
    K = 8                             # linear head output (num classes)

    key = jax.random.PRNGKey(0)
    ks = jax.random.split(key, 10)

    params = {
        "patch": PATCH,
        "w_text": 0.05 * jax.random.normal(ks[0], (D_TOK, D_TEXT), jnp.float32),
        "b_text": 0.01 * jax.random.normal(ks[1], (1, D_TEXT), jnp.float32),
        "w_img": 0.05 * jax.random.normal(ks[2], (D_PATCH, D_IMG), jnp.float32),
        "cls": 0.01 * jax.random.normal(ks[3], (1, D_IMG), jnp.float32),
        "w_head_p": 0.05 * jax.random.normal(ks[4], (D_TEXT, K), jnp.float32),
        "w_head_r": 0.05 * jax.random.normal(ks[5], (D_TEXT, K), jnp.float32),
        "w_head_c": 0.05 * jax.random.normal(ks[6], (D_IMG, K), jnp.float32),
        "b_head": 0.01 * jax.random.normal(ks[7], (1, K), jnp.float32),
    }

    # TODO(synk): the real text_embedder.encode() tokenizes raw strings; here
    # `prompt`/`response` are already (B, T, D_TOK) token features.
    prompt = jax.random.normal(ks[8], (B, T, D_TOK), jnp.float32)
    response = jax.random.normal(ks[9], (B, T, D_TOK), jnp.float32)
    image = jax.random.normal(jax.random.PRNGKey(42), (B, C, H, W), jnp.float32)

    folded = fold_params(params, t_prompt=T, t_response=T, img_chw=(C, H, W))
    folded = jax.tree_util.tree_map(jax.block_until_ready, folded)

    logits = combined_model_forward(folded, prompt, response, image,
                                    num_classes=K)
    logits = jax.block_until_ready(logits)

    ref = reference_forward_np(params, prompt, response, image)
    # Weight folding changes FP association vs the un-fused reference; 2e-3 is
    # comfortably above the f32 roundoff of a 1536-wide contraction.
    if not np.allclose(np.asarray(logits), ref, atol=2e-3, rtol=2e-3):
        raise AssertionError("Pallas output mismatch vs reference")

    print("KERNEL_OK")
</pallas_src>

<mosaic_0001>
module attributes {stable_mosaic.version = 11 : i64} {
  func.func @fused_forward_kernel(%arg0: memref<8x256xf32, #tpu.memory_space<vmem>>, %arg1: memref<8x256xf32, #tpu.memory_space<vmem>>, %arg2: memref<8x1024xf32, #tpu.memory_space<vmem>>, %arg3: memref<1536x128xf32, #tpu.memory_space<vmem>>, %arg4: memref<1x128xf32, #tpu.memory_space<vmem>>, %arg5: memref<8x128xf32, #tpu.memory_space<vmem>>) attributes {dimension_semantics = [], scalar_prefetch = 0 : i64, scratch_operands = 0 : i64, tpu.core_type = #tpu.core_type<tc>} {
    %c0 = arith.constant 0 : index
    %c0_0 = arith.constant 0 : index
    %0 = vector.load %arg0[%c0, %c0_0] : memref<8x256xf32, #tpu.memory_space<vmem>>, vector<8x256xf32>
    %c0_1 = arith.constant 0 : index
    %c0_2 = arith.constant 0 : index
    %1 = vector.load %arg1[%c0_1, %c0_2] : memref<8x256xf32, #tpu.memory_space<vmem>>, vector<8x256xf32>
    %c0_3 = arith.constant 0 : index
    %c0_4 = arith.constant 0 : index
    %2 = vector.load %arg2[%c0_3, %c0_4] : memref<8x1024xf32, #tpu.memory_space<vmem>>, vector<8x1024xf32>
    %3 = tpu.concatenate %0, %1, %2 in 1 : vector<8x256xf32>, vector<8x256xf32>, vector<8x1024xf32> -> vector<8x1536xf32>
    %c0_5 = arith.constant 0 : index
    %c0_6 = arith.constant 0 : index
    %4 = vector.load %arg3[%c0_5, %c0_6] : memref<1536x128xf32, #tpu.memory_space<vmem>>, vector<1536x128xf32>
    %cst = arith.constant dense<0.000000e+00> : vector<8x128xf32>
    %5 = tpu.matmul %3, %4, %cst {dimension_numbers = #tpu.dot_dimension_numbers<[1], [0], [0], [1], [0, 0, 1, 1], [], []>} : vector<8x1536xf32>, vector<1536x128xf32>, vector<8x128xf32> -> vector<8x128xf32>
    %c0_7 = arith.constant 0 : index
    %c0_8 = arith.constant 0 : index
    %6 = vector.load %arg4[%c0_7, %c0_8] : memref<1x128xf32, #tpu.memory_space<vmem>>, vector<1x128xf32>
    %7 = vector.broadcast %6 : vector<1x128xf32> to vector<8x128xf32>
    %8 = arith.addf %5, %7 : vector<8x128xf32>
    %c0_9 = arith.constant 0 : index
    %c0_10 = arith.constant 0 : index
    %9 = vector.load %arg5[%c0_9, %c0_10] : memref<8x128xf32, #tpu.memory_space<vmem>>, vector<8x128xf32>
    tpu.vector_store %arg5[%c0_9, %c0_10], %8 {strides = array<i32>} : memref<8x128xf32, #tpu.memory_space<vmem>>, vector<8x128xf32>,
    return
  }
}

</mosaic_0001>

<llo_original>
// kernel: combined_model_forward.1
$region0: #{combined_model_forward.1}
  #allocation0 [shape = 'u32[]', space=smem, size = 0x4, offset = 0x4, fixed_abs, tag = 'smem constant byte address 0x4 - core index']
  #allocation1 [shape = 'u32[144,128]{1,0:T(1,128)}', space=vmem, size = 0x12000, scoped, tag = 'internal scratch']
  %s0 = inlined_call_operand.vmem [shape: f32[8,256], index: 0, kind: input, shape index: {}]
  %s1 = inlined_call_operand.vmem [shape: f32[8,256], index: 1, kind: input, shape index: {}]
  %s2 = inlined_call_operand.vmem [shape: f32[8,1024], index: 2, kind: input, shape index: {}]
  %s3 = inlined_call_operand.hbm [shape: f32[1536,128], index: 3, kind: input, shape index: {}]
  %s4 = inlined_call_operand.vmem [shape: f32[1,128], index: 4, kind: input, shape index: {}]
  %s5 = inlined_call_operand.vmem [shape: f32[8,128], index: 5, kind: output, shape index: {}]
  %s6 = sld [smem:[#allocation0]]
  $region34: #{combined_model_forward.1} parent=0
    _
  %s8 = ssub.s32 1, %s6
  %s9 = scalar_select 0, %s8, %s6
  $region1: #{combined_model_forward.1} parent=0
    #allocation2 [shape = 'u8[786432]{0}', space=vmem, size = 0xc0000, scoped, tag = 'input window, operand 3, single buffered']
    #allocation3 [shape = 's32[1]{0}', space=sflag, size = 0x4, scoped, tag = 'scoped memory for combined_model_forward.1']
    %10 = vsyncpa [#allocation3], 0
    // Predicated region
    $region2: #{combined_model_forward.1} parent=1 // pred_check
      _
    $region3: #{combined_model_forward.1} parent=1 // pred_check_branch
      %12 = sbr.rel (0) target = $region5
    $region4: #{combined_model_forward.1} parent=1 // pred_region
      _
    $region5: #{combined_model_forward.1} parent=1 // pred_fallthru
      _
    // Predicated region
    $region6: #{combined_model_forward.1} parent=1 // pred_check
      _
    $region7: #{combined_model_forward.1} parent=1 // pred_check_branch
      %14 = sbr.rel (0) target = $region9
    $region8: #{combined_model_forward.1} parent=1 // pred_region
      _
    $region9: #{combined_model_forward.1} parent=1 // pred_fallthru
      _
    // Predicated region
    $region10: #{combined_model_forward.1} parent=1 // pred_check
      _
    $region11: #{combined_model_forward.1} parent=1 // pred_check_branch
      %16 = sbr.rel (0) target = $region13
    $region12: #{combined_model_forward.1} parent=1 // pred_region
      _
    $region13: #{combined_model_forward.1} parent=1 // pred_fallthru
      _
    // Predicated region
    $region14: #{combined_model_forward.1} parent=1 // pred_check
      _
    $region15: #{combined_model_forward.1} parent=1 // pred_check_branch
      %18 = sbr.rel (0) target = $region17
    $region16: #{combined_model_forward.1} parent=1 // pred_region
      %s20 = ssub.s32 24576, 24576
      %21 = vsyncadd [#allocation3], %s20
      %s22 = sshll.u32 [#allocation2], 4
      %s23 = int_to_ptr.vmem [resolvable:$true] %s22
      %28 = dma.hbm_to_vmem [thread:$0]  %s3, 24576, %s23, [#allocation3], 128, 128, 8
    $region17: #{combined_model_forward.1} parent=1 // pred_fallthru
      _
    // Predicated region
    $region18: #{combined_model_forward.1} parent=1 // pred_check
      _
    $region19: #{combined_model_forward.1} parent=1 // pred_check_branch
      %30 = sbr.rel (0) target = $region21
    $region20: #{combined_model_forward.1} parent=1 // pred_region
      _
    $region21: #{combined_model_forward.1} parent=1 // pred_fallthru
      _
    // Predicated region
    $region22: #{combined_model_forward.1} parent=1 // pred_check
      _
    $region23: #{combined_model_forward.1} parent=1 // pred_check_branch
      %32 = sbr.rel (0) target = $region25
    $region24: #{combined_model_forward.1} parent=1 // pred_region
      %33 = dma.done [#allocation3], 24576
    $region25: #{combined_model_forward.1} parent=1 // pred_fallthru
      _
    %v34 = vld [vmem:[%s0] sm:$0xff]
    %v35 = vld [vmem:[%s0 + $0x8] sm:$0xff]
    %v36 = vld [vmem:[%s1] sm:$0xff]
    %v37 = vld [vmem:[%s1 + $0x8] sm:$0xff]
    %v38 = vld [vmem:[%s2] sm:$0xff]
    %v39 = vld [vmem:[%s2 + $0x8] sm:$0xff]
    %v40 = vld [vmem:[%s2 + $0x10] sm:$0xff]
    %v41 = vld [vmem:[%s2 + $0x18] sm:$0xff]
    %v42 = vld [vmem:[%s2 + $0x20] sm:$0xff]
    %v43 = vld [vmem:[%s2 + $0x28] sm:$0xff]
    %v44 = vld [vmem:[%s2 + $0x30] sm:$0xff]
    %v45 = vld [vmem:[%s2 + $0x38] sm:$0xff]
    %v46 = vld [vmem:[#allocation2] sm:$0xff]
    %v47 = vld [vmem:[#allocation2 + $0x8] sm:$0xff]
    %v48 = vld [vmem:[#allocation2 + $0x10] sm:$0xff]
    %v49 = vld [vmem:[#allocation2 + $0x18] sm:$0xff]
    %v50 = vld [vmem:[#allocation2 + $0x20] sm:$0xff]
    %v51 = vld [vmem:[#allocation2 + $0x28] sm:$0xff]
    %v52 = vld [vmem:[#allocation2 + $0x30] sm:$0xff]
    %v53 = vld [vmem:[#allocation2 + $0x38] sm:$0xff]
    %v54 = vld [vmem:[#allocation2 + $0x40] sm:$0xff]
    %v55 = vld [vmem:[#allocation2 + $0x48] sm:$0xff]
    %v56 = vld [vmem:[#allocation2 + $0x50] sm:$0xff]
    %v57 = vld [vmem:[#allocation2 + $0x58] sm:$0xff]
    %v58 = vld [vmem:[#allocation2 + $0x60] sm:$0xff]
    %v59 = vld [vmem:[#allocation2 + $0x68] sm:$0xff]
    %v60 = vld [vmem:[#allocation2 + $0x70] sm:$0xff]
    %v61 = vld [vmem:[#allocation2 + $0x78] sm:$0xff]
    %v62 = vld [vmem:[#allocation2 + $0x80] sm:$0xff]
    %v63 = vld [vmem:[#allocation2 + $0x88] sm:$0xff]
    %v64 = vld [vmem:[#allocation2 + $0x90] sm:$0xff]
    %v65 = vld [vmem:[#allocation2 + $0x98] sm:$0xff]
    %v66 = vld [vmem:[#allocation2 + $0xa0] sm:$0xff]
    %v67 = vld [vmem:[#allocation2 + $0xa8] sm:$0xff]
    %v68 = vld [vmem:[#allocation2 + $0xb0] sm:$0xff]
    %v69 = vld [vmem:[#allocation2 + $0xb8] sm:$0xff]
    %v70 = vld [vmem:[#allocation2 + $0xc0] sm:$0xff]
    %v71 = vld [vmem:[#allocation2 + $0xc8] sm:$0xff]
    %v72 = vld [vmem:[#allocation2 + $0xd0] sm:$0xff]
    %v73 = vld [vmem:[#allocation2 + $0xd8] sm:$0xff]
    %v74 = vld [vmem:[#allocation2 + $0xe0] sm:$0xff]
    %v75 = vld [vmem:[#allocation2 + $0xe8] sm:$0xff]
    %v76 = vld [vmem:[#allocation2 + $0xf0] sm:$0xff]
    %v77 = vld [vmem:[#allocation2 + $0xf8] sm:$0xff]
    %v78 = vld [vmem:[#allocation2 + $0x100] sm:$0xff]
    %v79 = vld [vmem:[#allocation2 + $0x108] sm:$0xff]
    %v80 = vld [vmem:[#allocation2 + $0x110] sm:$0xff]
    %v81 = vld [vmem:[#allocation2 + $0x118] sm:$0xff]
    %v82 = vld [vmem:[#allocation2 + $0x120] sm:$0xff]
    %v83 = vld [vmem:[#allocation2 + $0x128] sm:$0xff]
    %v84 = vld [vmem:[#allocation2 + $0x130] sm:$0xff]
    %v85 = vld [vmem:[#allocation2 + $0x138] sm:$0xff]
    %v86 = vld [vmem:[#allocation2 + $0x140] sm:$0xff]
    %v87 = vld [vmem:[#allocation2 + $0x148] sm:$0xff]
    %v88 = vld [vmem:[#allocation2 + $0x150] sm:$0xff]
    %v89 = vld [vmem:[#allocation2 + $0x158] sm:$0xff]
    %v90 = vld [vmem:[#allocation2 + $0x160] sm:$0xff]
    %v91 = vld [vmem:[#allocation2 + $0x168] sm:$0xff]
    %v92 = vld [vmem:[#allocation2 + $0x170] sm:$0xff]
    %v93 = vld [vmem:[#allocation2 + $0x178] sm:$0xff]
    %v94 = vld [vmem:[#allocation2 + $0x180] sm:$0xff]
    %v95 = vld [vmem:[#allocation2 + $0x188] sm:$0xff]
    %v96 = vld [vmem:[#allocation2 + $0x190] sm:$0xff]
    %v97 = vld [vmem:[#allocation2 + $0x198] sm:$0xff]
    %v98 = vld [vmem:[#allocation2 + $0x1a0] sm:$0xff]
    %v99 = vld [vmem:[#allocation2 + $0x1a8] sm:$0xff]
    %v100 = vld [vmem:[#allocation2 + $0x1b0] sm:$0xff]
    %v101 = vld [vmem:[#allocation2 + $0x1b8] sm:$0xff]
    %v102 = vld [vmem:[#allocation2 + $0x1c0] sm:$0xff]
    %v103 = vld [vmem:[#allocation2 + $0x1c8] sm:$0xff]
    %v104 = vld [vmem:[#allocation2 + $0x1d0] sm:$0xff]
    %v105 = vld [vmem:[#allocation2 + $0x1d8] sm:$0xff]
    %v106 = vld [vmem:[#allocation2 + $0x1e0] sm:$0xff]
    %v107 = vld [vmem:[#allocation2 + $0x1e8] sm:$0xff]
    %v108 = vld [vmem:[#allocation2 + $0x1f0] sm:$0xff]
    %v109 = vld [vmem:[#allocation2 + $0x1f8] sm:$0xff]
    %v110 = vld [vmem:[#allocation2 + $0x200] sm:$0xff]
    %v111 = vld [vmem:[#allocation2 + $0x208] sm:$0xff]
    %v112 = vld [vmem:[#allocation2 + $0x210] sm:$0xff]
    %v113 = vld [vmem:[#allocation2 + $0x218] sm:$0xff]
    %v114 = vld [vmem:[#allocation2 + $0x220] sm:$0xff]
    %v115 = vld [vmem:[#allocation2 + $0x228] sm:$0xff]
    %v116 = vld [vmem:[#allocation2 + $0x230] sm:$0xff]
    %v117 = vld [vmem:[#allocation2 + $0x238] sm:$0xff]
    %v118 = vld [vmem:[#allocation2 + $0x240] sm:$0xff]
    %v119 = vld [vmem:[#allocation2 + $0x248] sm:$0xff]
    %v120 = vld [vmem:[#allocation2 + $0x250] sm:$0xff]
    %v121 = vld [vmem:[#allocation2 + $0x258] sm:$0xff]
    %v122 = vld [vmem:[#allocation2 + $0x260] sm:$0xff]
    %v123 = vld [vmem:[#allocation2 + $0x268] sm:$0xff]
    %v124 = vld [vmem:[#allocation2 + $0x270] sm:$0xff]
    %v125 = vld [vmem:[#allocation2 + $0x278] sm:$0xff]
    %v126 = vld [vmem:[#allocation2 + $0x280] sm:$0xff]
    %v127 = vld [vmem:[#allocation2 + $0x288] sm:$0xff]
    %v128 = vld [vmem:[#allocation2 + $0x290] sm:$0xff]
    %v129 = vld [vmem:[#allocation2 + $0x298] sm:$0xff]
    %v130 = vld [vmem:[#allocation2 + $0x2a0] sm:$0xff]
    %v131 = vld [vmem:[#allocation2 + $0x2a8] sm:$0xff]
    %v132 = vld [vmem:[#allocation2 + $0x2b0] sm:$0xff]
    %v133 = vld [vmem:[#allocation2 + $0x2b8] sm:$0xff]
    %v134 = vld [vmem:[#allocation2 + $0x2c0] sm:$0xff]
    %v135 = vld [vmem:[#allocation2 + $0x2c8] sm:$0xff]
    %v136 = vld [vmem:[#allocation2 + $0x2d0] sm:$0xff]
    %v137 = vld [vmem:[#allocation2 + $0x2d8] sm:$0xff]
    %v138 = vld [vmem:[#allocation2 + $0x2e0] sm:$0xff]
    %v139 = vld [vmem:[#allocation2 + $0x2e8] sm:$0xff]
    %v140 = vld [vmem:[#allocation2 + $0x2f0] sm:$0xff]
    %v141 = vld [vmem:[#allocation2 + $0x2f8] sm:$0xff]
    %v142 = vld [vmem:[#allocation2 + $0x300] sm:$0xff]
    %v143 = vld [vmem:[#allocation2 + $0x308] sm:$0xff]
    %v144 = vld [vmem:[#allocation2 + $0x310] sm:$0xff]
    %v145 = vld [vmem:[#allocation2 + $0x318] sm:$0xff]
    %v146 = vld [vmem:[#allocation2 + $0x320] sm:$0xff]
    %v147 = vld [vmem:[#allocation2 + $0x328] sm:$0xff]
    %v148 = vld [vmem:[#allocation2 + $0x330] sm:$0xff]
    %v149 = vld [vmem:[#allocation2 + $0x338] sm:$0xff]
    %v150 = vld [vmem:[#allocation2 + $0x340] sm:$0xff]
    %v151 = vld [vmem:[#allocation2 + $0x348] sm:$0xff]
    %v152 = vld [vmem:[#allocation2 + $0x350] sm:$0xff]
    %v153 = vld [vmem:[#allocation2 + $0x358] sm:$0xff]
    %v154 = vld [vmem:[#allocation2 + $0x360] sm:$0xff]
    %v155 = vld [vmem:[#allocation2 + $0x368] sm:$0xff]
    %v156 = vld [vmem:[#allocation2 + $0x370] sm:$0xff]
    %v157 = vld [vmem:[#allocation2 + $0x378] sm:$0xff]
    %v158 = vld [vmem:[#allocation2 + $0x380] sm:$0xff]
    %v159 = vld [vmem:[#allocation2 + $0x388] sm:$0xff]
    %v160 = vld [vmem:[#allocation2 + $0x390] sm:$0xff]
    %v161 = vld [vmem:[#allocation2 + $0x398] sm:$0xff]
    %v162 = vld [vmem:[#allocation2 + $0x3a0] sm:$0xff]
    %v163 = vld [vmem:[#allocation2 + $0x3a8] sm:$0xff]
    %v164 = vld [vmem:[#allocation2 + $0x3b0] sm:$0xff]
    %v165 = vld [vmem:[#allocation2 + $0x3b8] sm:$0xff]
    %v166 = vld [vmem:[#allocation2 + $0x3c0] sm:$0xff]
    %v167 = vld [vmem:[#allocation2 + $0x3c8] sm:$0xff]
    %v168 = vld [vmem:[#allocation2 + $0x3d0] sm:$0xff]
    %v169 = vld [vmem:[#allocation2 + $0x3d8] sm:$0xff]
    %v170 = vld [vmem:[#allocation2 + $0x3e0] sm:$0xff]
    %v171 = vld [vmem:[#allocation2 + $0x3e8] sm:$0xff]
    %v172 = vld [vmem:[#allocation2 + $0x3f0] sm:$0xff]
    %v173 = vld [vmem:[#allocation2 + $0x3f8] sm:$0xff]
    %v174 = vld [vmem:[#allocation2 + $0x400] sm:$0xff]
    %v175 = vld [vmem:[#allocation2 + $0x408] sm:$0xff]
    %v176 = vld [vmem:[#allocation2 + $0x410] sm:$0xff]
    %v177 = vld [vmem:[#allocation2 + $0x418] sm:$0xff]
    %v178 = vld [vmem:[#allocation2 + $0x420] sm:$0xff]
    %v179 = vld [vmem:[#allocation2 + $0x428] sm:$0xff]
    %v180 = vld [vmem:[#allocation2 + $0x430] sm:$0xff]
    %v181 = vld [vmem:[#allocation2 + $0x438] sm:$0xff]
    %v182 = vld [vmem:[#allocation2 + $0x440] sm:$0xff]
    %v183 = vld [vmem:[#allocation2 + $0x448] sm:$0xff]
    %v184 = vld [vmem:[#allocation2 + $0x450] sm:$0xff]
    %v185 = vld [vmem:[#allocation2 + $0x458] sm:$0xff]
    %v186 = vld [vmem:[#allocation2 + $0x460] sm:$0xff]
    %v187 = vld [vmem:[#allocation2 + $0x468] sm:$0xff]
    %v188 = vld [vmem:[#allocation2 + $0x470] sm:$0xff]
    %v189 = vld [vmem:[#allocation2 + $0x478] sm:$0xff]
    %v190 = vld [vmem:[#allocation2 + $0x480] sm:$0xff]
    %v191 = vld [vmem:[#allocation2 + $0x488] sm:$0xff]
    %v192 = vld [vmem:[#allocation2 + $0x490] sm:$0xff]
    %v193 = vld [vmem:[#allocation2 + $0x498] sm:$0xff]
    %v194 = vld [vmem:[#allocation2 + $0x4a0] sm:$0xff]
    %v195 = vld [vmem:[#allocation2 + $0x4a8] sm:$0xff]
    %v196 = vld [vmem:[#allocation2 + $0x4b0] sm:$0xff]
    %v197 = vld [vmem:[#allocation2 + $0x4b8] sm:$0xff]
    %v198 = vld [vmem:[#allocation2 + $0x4c0] sm:$0xff]
    %v199 = vld [vmem:[#allocation2 + $0x4c8] sm:$0xff]
    %v200 = vld [vmem:[#allocation2 + $0x4d0] sm:$0xff]
    %v201 = vld [vmem:[#allocation2 + $0x4d8] sm:$0xff]
    %v202 = vld [vmem:[#allocation2 + $0x4e0] sm:$0xff]
    %v203 = vld [vmem:[#allocation2 + $0x4e8] sm:$0xff]
    %v204 = vld [vmem:[#allocation2 + $0x4f0] sm:$0xff]
    %v205 = vld [vmem:[#allocation2 + $0x4f8] sm:$0xff]
    %v206 = vld [vmem:[#allocation2 + $0x500] sm:$0xff]
    %v207 = vld [vmem:[#allocation2 + $0x508] sm:$0xff]
    %v208 = vld [vmem:[#allocation2 + $0x510] sm:$0xff]
    %v209 = vld [vmem:[#allocation2 + $0x518] sm:$0xff]
    %v210 = vld [vmem:[#allocation2 + $0x520] sm:$0xff]
    %v211 = vld [vmem:[#allocation2 + $0x528] sm:$0xff]
    %v212 = vld [vmem:[#allocation2 + $0x530] sm:$0xff]
    %v213 = vld [vmem:[#allocation2 + $0x538] sm:$0xff]
    %v214 = vld [vmem:[#allocation2 + $0x540] sm:$0xff]
    %v215 = vld [vmem:[#allocation2 + $0x548] sm:$0xff]
    %v216 = vld [vmem:[#allocation2 + $0x550] sm:$0xff]
    %v217 = vld [vmem:[#allocation2 + $0x558] sm:$0xff]
    %v218 = vld [vmem:[#allocation2 + $0x560] sm:$0xff]
    %v219 = vld [vmem:[#allocation2 + $0x568] sm:$0xff]
    %v220 = vld [vmem:[#allocation2 + $0x570] sm:$0xff]
    %v221 = vld [vmem:[#allocation2 + $0x578] sm:$0xff]
    %v222 = vld [vmem:[#allocation2 + $0x580] sm:$0xff]
    %v223 = vld [vmem:[#allocation2 + $0x588] sm:$0xff]
    %v224 = vld [vmem:[#allocation2 + $0x590] sm:$0xff]
    %v225 = vld [vmem:[#allocation2 + $0x598] sm:$0xff]
    %v226 = vld [vmem:[#allocation2 + $0x5a0] sm:$0xff]
    %v227 = vld [vmem:[#allocation2 + $0x5a8] sm:$0xff]
    %v228 = vld [vmem:[#allocation2 + $0x5b0] sm:$0xff]
    %v229 = vld [vmem:[#allocation2 + $0x5b8] sm:$0xff]
    %v230 = vld [vmem:[#allocation2 + $0x5c0] sm:$0xff]
    %v231 = vld [vmem:[#allocation2 + $0x5c8] sm:$0xff]
    %v232 = vld [vmem:[#allocation2 + $0x5d0] sm:$0xff]
    %v233 = vld [vmem:[#allocation2 + $0x5d8] sm:$0xff]
    %v234 = vld [vmem:[#allocation2 + $0x5e0] sm:$0xff]
    %v235 = vld [vmem:[#allocation2 + $0x5e8] sm:$0xff]
    %v236 = vld [vmem:[#allocation2 + $0x5f0] sm:$0xff]
    %v237 = vld [vmem:[#allocation2 + $0x5f8] sm:$0xff]
    %v238 = vld [vmem:[%s4] sm:$0x1]
    %v240 = vlaneseq
    %v241 = vshrl.u32 %v240, 7
    %v242 = vsub.s32 0, %v241
    %v243 = vrot.slane %v238, %v242
    %245 = vmatprep.subr.mxu0 0.0
    %246 = vmatpush1.msra.mxu0 %v46
    %247 = vmatprep.subr.mxu0 0.0
    %248 = vmatpush1.msra.mxu0 %v47
    %249 = vmatprep.subr.mxu0 0.0
    %250 = vmatpush1.msra.mxu0 %v48
    %251 = vmatprep.subr.mxu0 0.0
    %252 = vmatpush1.msra.mxu0 %v49
    %253 = vmatprep.subr.mxu0 0.0
    %254 = vmatpush1.msra.mxu0 %v50
    %255 = vmatprep.subr.mxu0 0.0
    %256 = vmatpush1.msra.mxu0 %v51
    %257 = vmatprep.subr.mxu0 0.0
    %258 = vmatpush1.msra.mxu0 %v52
    %259 = vmatprep.subr.mxu0 0.0
    %260 = vmatpush1.msra.mxu0 %v53
    %261 = vmatprep.subr.mxu0 0.0
    %262 = vmatpush1.msra.mxu0 %v54
    %263 = vmatprep.subr.mxu0 0.0
    %264 = vmatpush1.msra.mxu0 %v55
    %265 = vmatprep.subr.mxu0 0.0
    %266 = vmatpush1.msra.mxu0 %v56
    %267 = vmatprep.subr.mxu0 0.0
    %268 = vmatpush1.msra.mxu0 %v57
    %269 = vmatprep.subr.mxu0 0.0
    %270 = vmatpush1.msra.mxu0 %v58
    %271 = vmatprep.subr.mxu0 0.0
    %272 = vmatpush1.msra.mxu0 %v59
    %273 = vmatprep.subr.mxu0 0.0
    %274 = vmatpush1.msra.mxu0 %v60
    %275 = vmatprep.subr.mxu0 0.0
    %276 = vmatpush1.msra.mxu0 %v61
    %277 = vmatprep.subr.mxu0 0.0
    %278 = vmatpush1.msra.mxu0 %v62
    %279 = vmatprep.subr.mxu0 0.0
    %280 = vmatpush1.msra.mxu0 %v63
    %281 = vmatprep.subr.mxu0 0.0
    %282 = vmatpush1.msra.mxu0 %v64
    %283 = vmatprep.subr.mxu0 0.0
    %284 = vmatpush1.msra.mxu0 %v65
    %285 = vmatprep.subr.mxu0 0.0
    %286 = vmatpush1.msra.mxu0 %v66
    %287 = vmatprep.subr.mxu0 0.0
    %288 = vmatpush1.msra.mxu0 %v67
    %289 = vmatprep.subr.mxu0 0.0
    %290 = vmatpush1.msra.mxu0 %v68
    %291 = vmatprep.subr.mxu0 0.0
    %292 = vmatpush1.msra.mxu0 %v69
    %293 = vmatprep.subr.mxu0 0.0
    %294 = vmatpush1.msra.mxu0 %v70
    %295 = vmatprep.subr.mxu0 0.0
    %296 = vmatpush1.msra.mxu0 %v71
    %297 = vmatprep.subr.mxu0 0.0
    %298 = vmatpush1.msra.mxu0 %v72
    %299 = vmatprep.subr.mxu0 0.0
    %300 = vmatpush1.msra.mxu0 %v73
    %301 = vmatprep.subr.mxu0 0.0
    %302 = vmatpush1.msra.mxu0 %v74
    %303 = vmatprep.subr.mxu0 0.0
    %304 = vmatpush1.msra.mxu0 %v75
    %305 = vmatprep.subr.mxu0 0.0
    %306 = vmatpush1.msra.mxu0 %v76
    %307 = vmatprep.subr.mxu0 0.0
    %308 = vmatpush1.msra.mxu0 %v77
    %309 = vmatprep.mubr.f32.mxu0 %v35
    %310 = vmatmul.mubr.f32.gmra.mrb[0].mxu0 %v34
    %v311 = vpop.f32.mrb[0].mxu0
    %v312 = vadd.f32 %v243, %v311
    %v313 = vpop.f32.mrb[0].mxu0
    %314 = vdwg.mxu0
    %315 = vmatprep.subr.mxu0 0.0
    %316 = vmatpush1.msra.mxu0 %v78
    %317 = vmatprep.subr.mxu0 0.0
    %318 = vmatpush1.msra.mxu0 %v79
    %319 = vmatprep.subr.mxu0 0.0
    %320 = vmatpush1.msra.mxu0 %v80
    %321 = vmatprep.subr.mxu0 0.0
    %322 = vmatpush1.msra.mxu0 %v81
    %323 = vmatprep.subr.mxu0 0.0
    %324 = vmatpush1.msra.mxu0 %v82
    %325 = vmatprep.subr.mxu0 0.0
    %326 = vmatpush1.msra.mxu0 %v83
    %327 = vmatprep.subr.mxu0 0.0
    %328 = vmatpush1.msra.mxu0 %v84
    %329 = vmatprep.subr.mxu0 0.0
    %330 = vmatpush1.msra.mxu0 %v85
    %331 = vmatprep.subr.mxu0 0.0
    %332 = vmatpush1.msra.mxu0 %v86
    %333 = vmatprep.subr.mxu0 0.0
    %334 = vmatpush1.msra.mxu0 %v87
    %335 = vmatprep.subr.mxu0 0.0
    %336 = vmatpush1.msra.mxu0 %v88
    %337 = vmatprep.subr.mxu0 0.0
    %338 = vmatpush1.msra.mxu0 %v89
    %339 = vmatprep.subr.mxu0 0.0
    %340 = vmatpush1.msra.mxu0 %v90
    %341 = vmatprep.subr.mxu0 0.0
    %342 = vmatpush1.msra.mxu0 %v91
    %343 = vmatprep.subr.mxu0 0.0
    %344 = vmatpush1.msra.mxu0 %v92
    %345 = vmatprep.subr.mxu0 0.0
    %346 = vmatpush1.msra.mxu0 %v93
    %347 = vmatprep.subr.mxu0 0.0
    %348 = vmatpush1.msra.mxu0 %v94
    %349 = vmatprep.subr.mxu0 0.0
    %350 = vmatpush1.msra.mxu0 %v95
    %351 = vmatprep.subr.mxu0 0.0
    %352 = vmatpush1.msra.mxu0 %v96
    %353 = vmatprep.subr.mxu0 0.0
    %354 = vmatpush1.msra.mxu0 %v97
    %355 = vmatprep.subr.mxu0 0.0
    %356 = vmatpush1.msra.mxu0 %v98
    %357 = vmatprep.subr.mxu0 0.0
    %358 = vmatpush1.msra.mxu0 %v99
    %359 = vmatprep.subr.mxu0 0.0
    %360 = vmatpush1.msra.mxu0 %v100
    %361 = vmatprep.subr.mxu0 0.0
    %362 = vmatpush1.msra.mxu0 %v101
    %363 = vmatprep.subr.mxu0 0.0
    %364 = vmatpush1.msra.mxu0 %v102
    %365 = vmatprep.subr.mxu0 0.0
    %366 = vmatpush1.msra.mxu0 %v103
    %367 = vmatprep.subr.mxu0 0.0
    %368 = vmatpush1.msra.mxu0 %v104
    %369 = vmatprep.subr.mxu0 0.0
    %370 = vmatpush1.msra.mxu0 %v105
    %371 = vmatprep.subr.mxu0 0.0
    %372 = vmatpush1.msra.mxu0 %v106
    %373 = vmatprep.subr.mxu0 0.0
    %374 = vmatpush1.msra.mxu0 %v107
    %375 = vmatprep.subr.mxu0 0.0
    %376 = vmatpush1.msra.mxu0 %v108
    %377 = vmatprep.subr.mxu0 0.0
    %378 = vmatpush1.msra.mxu0 %v109
    %379 = vmatprep.mubr.f32.mxu0 %v37
    %380 = vmatmul.mubr.f32.gmra.mrb[0].mxu0 %v36
    %v381 = vpop.f32.mrb[0].mxu0
    %v382 = vadd.f32 %v312, %v381
    %v383 = vpop.f32.mrb[0].mxu0
    %384 = vdwg.mxu0
    %385 = vmatprep.subr.mxu0 0.0
    %386 = vmatpush1.msra.mxu0 %v110
    %387 = vmatprep.subr.mxu0 0.0
    %388 = vmatpush1.msra.mxu0 %v111
    %389 = vmatprep.subr.mxu0 0.0
    %390 = vmatpush1.msra.mxu0 %v112
    %391 = vmatprep.subr.mxu0 0.0
    %392 = vmatpush1.msra.mxu0 %v113
    %393 = vmatprep.subr.mxu0 0.0
    %394 = vmatpush1.msra.mxu0 %v114
    %395 = vmatprep.subr.mxu0 0.0
    %396 = vmatpush1.msra.mxu0 %v115
    %397 = vmatprep.subr.mxu0 0.0
    %398 = vmatpush1.msra.mxu0 %v116
    %399 = vmatprep.subr.mxu0 0.0
    %400 = vmatpush1.msra.mxu0 %v117
    %401 = vmatprep.subr.mxu0 0.0
    %402 = vmatpush1.msra.mxu0 %v118
    %403 = vmatprep.subr.mxu0 0.0
    %404 = vmatpush1.msra.mxu0 %v119
    %405 = vmatprep.subr.mxu0 0.0
    %406 = vmatpush1.msra.mxu0 %v120
    %407 = vmatprep.subr.mxu0 0.0
    %408 = vmatpush1.msra.mxu0 %v121
    %409 = vmatprep.subr.mxu0 0.0
    %410 = vmatpush1.msra.mxu0 %v122
    %411 = vmatprep.subr.mxu0 0.0
    %412 = vmatpush1.msra.mxu0 %v123
    %413 = vmatprep.subr.mxu0 0.0
    %414 = vmatpush1.msra.mxu0 %v124
    %415 = vmatprep.subr.mxu0 0.0
    %416 = vmatpush1.msra.mxu0 %v125
    %417 = vmatprep.subr.mxu0 0.0
    %418 = vmatpush1.msra.mxu0 %v126
    %419 = vmatprep.subr.mxu0 0.0
    %420 = vmatpush1.msra.mxu0 %v127
    %421 = vmatprep.subr.mxu0 0.0
    %422 = vmatpush1.msra.mxu0 %v128
    %423 = vmatprep.subr.mxu0 0.0
    %424 = vmatpush1.msra.mxu0 %v129
    %425 = vmatprep.subr.mxu0 0.0
    %426 = vmatpush1.msra.mxu0 %v130
    %427 = vmatprep.subr.mxu0 0.0
    %428 = vmatpush1.msra.mxu0 %v131
    %429 = vmatprep.subr.mxu0 0.0
    %430 = vmatpush1.msra.mxu0 %v132
    %431 = vmatprep.subr.mxu0 0.0
    %432 = vmatpush1.msra.mxu0 %v133
    %433 = vmatprep.subr.mxu0 0.0
    %434 = vmatpush1.msra.mxu0 %v134
    %435 = vmatprep.subr.mxu0 0.0
    %436 = vmatpush1.msra.mxu0 %v135
    %437 = vmatprep.subr.mxu0 0.0
    %438 = vmatpush1.msra.mxu0 %v136
    %439 = vmatprep.subr.mxu0 0.0
    %440 = vmatpush1.msra.mxu0 %v137
    %441 = vmatprep.subr.mxu0 0.0
    %442 = vmatpush1.msra.mxu0 %v138
    %443 = vmatprep.subr.mxu0 0.0
    %444 = vmatpush1.msra.mxu0 %v139
    %445 = vmatprep.subr.mxu0 0.0
    %446 = vmatpush1.msra.mxu0 %v140
    %447 = vmatprep.subr.mxu0 0.0
    %448 = vmatpush1.msra.mxu0 %v141
    %449 = vmatprep.mubr.f32.mxu0 %v39
    %450 = vmatmul.mubr.f32.gmra.mrb[0].mxu0 %v38
    %v451 = vpop.f32.mrb[0].mxu0
    %v452 = vadd.f32 %v382, %v451
    %v453 = vpop.f32.mrb[0].mxu0
    %454 = vdwg.mxu0
    %455 = vmatprep.subr.mxu0 0.0
    %456 = vmatpush1.msra.mxu0 %v142
    %457 = vmatprep.subr.mxu0 0.0
    %458 = vmatpush1.msra.mxu0 %v143
    %459 = vmatprep.subr.mxu0 0.0
    %460 = vmatpush1.msra.mxu0 %v144
    %461 = vmatprep.subr.mxu0 0.0
    %462 = vmatpush1.msra.mxu0 %v145
    %463 = vmatprep.subr.mxu0 0.0
    %464 = vmatpush1.msra.mxu0 %v146
    %465 = vmatprep.subr.mxu0 0.0
    %466 = vmatpush1.msra.mxu0 %v147
    %467 = vmatprep.subr.mxu0 0.0
    %468 = vmatpush1.msra.mxu0 %v148
    %469 = vmatprep.subr.mxu0 0.0
    %470 = vmatpush1.msra.mxu0 %v149
    %471 = vmatprep.subr.mxu0 0.0
    %472 = vmatpush1.msra.mxu0 %v150
    %473 = vmatprep.subr.mxu0 0.0
    %474 = vmatpush1.msra.mxu0 %v151
    %475 = vmatprep.subr.mxu0 0.0
    %476 = vmatpush1.msra.mxu0 %v152
    %477 = vmatprep.subr.mxu0 0.0
    %478 = vmatpush1.msra.mxu0 %v153
    %479 = vmatprep.subr.mxu0 0.0
    %480 = vmatpush1.msra.mxu0 %v154
    %481 = vmatprep.subr.mxu0 0.0
    %482 = vmatpush1.msra.mxu0 %v155
    %483 = vmatprep.subr.mxu0 0.0
    %484 = vmatpush1.msra.mxu0 %v156
    %485 = vmatprep.subr.mxu0 0.0
    %486 = vmatpush1.msra.mxu0 %v157
    %487 = vmatprep.subr.mxu0 0.0
    %488 = vmatpush1.msra.mxu0 %v158
    %489 = vmatprep.subr.mxu0 0.0
    %490 = vmatpush1.msra.mxu0 %v159
    %491 = vmatprep.subr.mxu0 0.0
    %492 = vmatpush1.msra.mxu0 %v160
    %493 = vmatprep.subr.mxu0 0.0
    %494 = vmatpush1.msra.mxu0 %v161
    %495 = vmatprep.subr.mxu0 0.0
    %496 = vmatpush1.msra.mxu0 %v162
    %497 = vmatprep.subr.mxu0 0.0
    %498 = vmatpush1.msra.mxu0 %v163
    %499 = vmatprep.subr.mxu0 0.0
    %500 = vmatpush1.msra.mxu0 %v164
    %501 = vmatprep.subr.mxu0 0.0
    %502 = vmatpush1.msra.mxu0 %v165
    %503 = vmatprep.subr.mxu0 0.0
    %504 = vmatpush1.msra.mxu0 %v166
    %505 = vmatprep.subr.mxu0 0.0
    %506 = vmatpush1.msra.mxu0 %v167
    %507 = vmatprep.subr.mxu0 0.0
    %508 = vmatpush1.msra.mxu0 %v168
    %509 = vmatprep.subr.mxu0 0.0
    %510 = vmatpush1.msra.mxu0 %v169
    %511 = vmatprep.subr.mxu0 0.0
    %512 = vmatpush1.msra.mxu0 %v170
    %513 = vmatprep.subr.mxu0 0.0
    %514 = vmatpush1.msra.mxu0 %v171
    %515 = vmatprep.subr.mxu0 0.0
    %516 = vmatpush1.msra.mxu0 %v172
    %517 = vmatprep.subr.mxu0 0.0
    %518 = vmatpush1.msra.mxu0 %v173
    %519 = vmatprep.mubr.f32.mxu0 %v41
    %520 = vmatmul.mubr.f32.gmra.mrb[0].mxu0 %v40
    %v521 = vpop.f32.mrb[0].mxu0
    %v522 = vadd.f32 %v452, %v521
    %v523 = vpop.f32.mrb[0].mxu0
    %524 = vdwg.mxu0
    %525 = vmatprep.subr.mxu0 0.0
    %526 = vmatpush1.msra.mxu0 %v174
    %527 = vmatprep.subr.mxu0 0.0
    %528 = vmatpush1.msra.mxu0 %v175
    %529 = vmatprep.subr.mxu0 0.0
    %530 = vmatpush1.msra.mxu0 %v176
    %531 = vmatprep.subr.mxu0 0.0
    %532 = vmatpush1.msra.mxu0 %v177
    %533 = vmatprep.subr.mxu0 0.0
    %534 = vmatpush1.msra.mxu0 %v178
    %535 = vmatprep.subr.mxu0 0.0
    %536 = vmatpush1.msra.mxu0 %v179
    %537 = vmatprep.subr.mxu0 0.0
    %538 = vmatpush1.msra.mxu0 %v180
    %539 = vmatprep.subr.mxu0 0.0
    %540 = vmatpush1.msra.mxu0 %v181
    %541 = vmatprep.subr.mxu0 0.0
    %542 = vmatpush1.msra.mxu0 %v182
    %543 = vmatprep.subr.mxu0 0.0
    %544 = vmatpush1.msra.mxu0 %v183
    %545 = vmatprep.subr.mxu0 0.0
    %546 = vmatpush1.msra.mxu0 %v184
    %547 = vmatprep.subr.mxu0 0.0
    %548 = vmatpush1.msra.mxu0 %v185
    %549 = vmatprep.subr.mxu0 0.0
    %550 = vmatpush1.msra.mxu0 %v186
    %551 = vmatprep.subr.mxu0 0.0
    %552 = vmatpush1.msra.mxu0 %v187
    %553 = vmatprep.subr.mxu0 0.0
    %554 = vmatpush1.msra.mxu0 %v188
    %555 = vmatprep.subr.mxu0 0.0
    %556 = vmatpush1.msra.mxu0 %v189
    %557 = vmatprep.subr.mxu0 0.0
    %558 = vmatpush1.msra.mxu0 %v190
    %559 = vmatprep.subr.mxu0 0.0
    %560 = vmatpush1.msra.mxu0 %v191
    %561 = vmatprep.subr.mxu0 0.0
    %562 = vmatpush1.msra.mxu0 %v192
    %563 = vmatprep.subr.mxu0 0.0
    %564 = vmatpush1.msra.mxu0 %v193
    %565 = vmatprep.subr.mxu0 0.0
    %566 = vmatpush1.msra.mxu0 %v194
    %567 = vmatprep.subr.mxu0 0.0
    %568 = vmatpush1.msra.mxu0 %v195
    %569 = vmatprep.subr.mxu0 0.0
    %570 = vmatpush1.msra.mxu0 %v196
    %571 = vmatprep.subr.mxu0 0.0
    %572 = vmatpush1.msra.mxu0 %v197
    %573 = vmatprep.subr.mxu0 0.0
    %574 = vmatpush1.msra.mxu0 %v198
    %575 = vmatprep.subr.mxu0 0.0
    %576 = vmatpush1.msra.mxu0 %v199
    %577 = vmatprep.subr.mxu0 0.0
    %578 = vmatpush1.msra.mxu0 %v200
    %579 = vmatprep.subr.mxu0 0.0
    %580 = vmatpush1.msra.mxu0 %v201
    %581 = vmatprep.subr.mxu0 0.0
    %582 = vmatpush1.msra.mxu0 %v202
    %583 = vmatprep.subr.mxu0 0.0
    %584 = vmatpush1.msra.mxu0 %v203
    %585 = vmatprep.subr.mxu0 0.0
    %586 = vmatpush1.msra.mxu0 %v204
    %587 = vmatprep.subr.mxu0 0.0
    %588 = vmatpush1.msra.mxu0 %v205
    %589 = vmatprep.mubr.f32.mxu0 %v43
    %590 = vmatmul.mubr.f32.gmra.mrb[0].mxu0 %v42
    %v591 = vpop.f32.mrb[0].mxu0
    %v592 = vadd.f32 %v522, %v591
    %v593 = vpop.f32.mrb[0].mxu0
    %594 = vdwg.mxu0
    %595 = vmatprep.subr.mxu0 0.0
    %596 = vmatpush1.msra.mxu0 %v206
    %597 = vmatprep.subr.mxu0 0.0
    %598 = vmatpush1.msra.mxu0 %v207
    %599 = vmatprep.subr.mxu0 0.0
    %600 = vmatpush1.msra.mxu0 %v208
    %601 = vmatprep.subr.mxu0 0.0
    %602 = vmatpush1.msra.mxu0 %v209
    %603 = vmatprep.subr.mxu0 0.0
    %604 = vmatpush1.msra.mxu0 %v210
    %605 = vmatprep.subr.mxu0 0.0
    %606 = vmatpush1.msra.mxu0 %v211
    %607 = vmatprep.subr.mxu0 0.0
    %608 = vmatpush1.msra.mxu0 %v212
    %609 = vmatprep.subr.mxu0 0.0
    %610 = vmatpush1.msra.mxu0 %v213
    %611 = vmatprep.subr.mxu0 0.0
    %612 = vmatpush1.msra.mxu0 %v214
    %613 = vmatprep.subr.mxu0 0.0
    %614 = vmatpush1.msra.mxu0 %v215
    %615 = vmatprep.subr.mxu0 0.0
    %616 = vmatpush1.msra.mxu0 %v216
    %617 = vmatprep.subr.mxu0 0.0
    %618 = vmatpush1.msra.mxu0 %v217
    %619 = vmatprep.subr.mxu0 0.0
    %620 = vmatpush1.msra.mxu0 %v218
    %621 = vmatprep.subr.mxu0 0.0
    %622 = vmatpush1.msra.mxu0 %v219
    %623 = vmatprep.subr.mxu0 0.0
    %624 = vmatpush1.msra.mxu0 %v220
    %625 = vmatprep.subr.mxu0 0.0
    %626 = vmatpush1.msra.mxu0 %v221
    %627 = vmatprep.subr.mxu0 0.0
    %628 = vmatpush1.msra.mxu0 %v222
    %629 = vmatprep.subr.mxu0 0.0
    %630 = vmatpush1.msra.mxu0 %v223
    %631 = vmatprep.subr.mxu0 0.0
    %632 = vmatpush1.msra.mxu0 %v224
    %633 = vmatprep.subr.mxu0 0.0
    %634 = vmatpush1.msra.mxu0 %v225
    %635 = vmatprep.subr.mxu0 0.0
    %636 = vmatpush1.msra.mxu0 %v226
    %637 = vmatprep.subr.mxu0 0.0
    %638 = vmatpush1.msra.mxu0 %v227
    %639 = vmatprep.subr.mxu0 0.0
    %640 = vmatpush1.msra.mxu0 %v228
    %641 = vmatprep.subr.mxu0 0.0
    %642 = vmatpush1.msra.mxu0 %v229
    %643 = vmatprep.subr.mxu0 0.0
    %644 = vmatpush1.msra.mxu0 %v230
    %645 = vmatprep.subr.mxu0 0.0
    %646 = vmatpush1.msra.mxu0 %v231
    %647 = vmatprep.subr.mxu0 0.0
    %648 = vmatpush1.msra.mxu0 %v232
    %649 = vmatprep.subr.mxu0 0.0
    %650 = vmatpush1.msra.mxu0 %v233
    %651 = vmatprep.subr.mxu0 0.0
    %652 = vmatpush1.msra.mxu0 %v234
    %653 = vmatprep.subr.mxu0 0.0
    %654 = vmatpush1.msra.mxu0 %v235
    %655 = vmatprep.subr.mxu0 0.0
    %656 = vmatpush1.msra.mxu0 %v236
    %657 = vmatprep.subr.mxu0 0.0
    %658 = vmatpush1.msra.mxu0 %v237
    %659 = vmatprep.mubr.f32.mxu0 %v45
    %660 = vmatmul.mubr.f32.gmra.mrb[0].mxu0 %v44
    %v661 = vpop.f32.mrb[0].mxu0
    %v662 = vadd.f32 %v592, %v661
    %v663 = vpop.f32.mrb[0].mxu0
    %664 = vdwg.mxu0
    %665 = vst [vmem:[%s5] sm:$0xff] %v662
    // Predicated region
    $region26: #{combined_model_forward.1} parent=1 // pred_check
      _
    $region27: #{combined_model_forward.1} parent=1 // pred_check_branch
      %667 = sbr.rel (0) target = $region29
    $region28: #{combined_model_forward.1} parent=1 // pred_region
      _
    $region29: #{combined_model_forward.1} parent=1 // pred_fallthru
      _
    // Predicated region
    $region30: #{combined_model_forward.1} parent=1 // pred_check
      _
    $region31: #{combined_model_forward.1} parent=1 // pred_check_branch
      %669 = sbr.rel (0) target = $region33
    $region32: #{combined_model_forward.1} parent=1 // pred_region
      _
    $region33: #{combined_model_forward.1} parent=1 // pred_fallthru
      _
    %670 = vsyncpa [#allocation3], 1

</llo_original>
